<compile_context>
chip_gen: v5e
topology: v5e:2x2
jax: 0.10.0
libtpu: 0.0.40
codegen_flags: <defaults>
</compile_context>

<pallas_src>
import functools

import jax
import jax.numpy as jnp
from jax import lax
from jax.experimental import pallas as pl
from jax.experimental.pallas import tpu as pltpu


def _round_up(x, m):
    return (x + m - 1) // m * m


def _cdiv(a, b):
    return (a + b - 1) // b


def qnetwork_kernel(x_ref, w1_ref, b1_ref, w2_ref, b2_ref, w3t_ref, b3t_ref, o_ref):
    """One batch tile: fc1 -> ReLU -> fc2 -> ReLU -> fc3 (transposed), bf16 MXU / f32 acc."""
    x = x_ref[...].astype(jnp.bfloat16)                                  # (TB, S)
    h1 = jnp.dot(x, w1_ref[...], preferred_element_type=jnp.float32) + b1_ref[...]
    h1 = jnp.maximum(h1, 0.0)                                            # (TB, H_PAD) f32
    h2 = jnp.dot(h1.astype(jnp.bfloat16), w2_ref[...],
                 preferred_element_type=jnp.float32) + b2_ref[...]
    h2 = jnp.maximum(h2, 0.0)                                            # (TB, H_PAD) f32
    # Final layer computed transposed so the output is (A_PAD, TB): batch in lanes,
    # actions in sublanes -> lane-dense, 16x smaller writeback than (TB, 128).
    out_t = lax.dot_general(
        w3t_ref[...], h2.astype(jnp.bfloat16),
        dimension_numbers=(((1,), (1,)), ((), ())),                      # (A_PAD,H)x(TB,H)^T
        preferred_element_type=jnp.float32,
    ) + b3t_ref[...]                                                     # (A_PAD, TB) f32
    o_ref[...] = out_t


def prepare_params(w1, b1, w2, b2, w3, b3, hidden_pad=128, out_pad=8):
    """Zero-pad hidden -> 128 lanes, transpose-pad the output layer to (8, 128).

    Inputs are f32 with PyTorch weights transposed to (in, out) and biases as (1, out):
      w1 (S, H), b1 (1, H), w2 (H, H), b2 (1, H), w3 (H, A), b3 (1, A)
    Zero padding is exact for the forward pass (padded hidden units are ReLU(0)=0,
    padded output sublanes are sliced off by the wrapper).
    """
    S, H = w1.shape
    A = w3.shape[1]
    assert b1.shape == (1, H), f"b1 must be (1, {H}), got {b1.shape}"
    assert w2.shape == (H, H), f"w2 must be ({H}, {H}), got {w2.shape}"
    assert b2.shape == (1, H), f"b2 must be (1, {H}), got {b2.shape}"
    assert w3.shape == (H, A), f"w3 must be ({H}, A), got {w3.shape}"
    assert b3.shape == (1, A), f"b3 must be (1, {A}), got {b3.shape}"
    assert H <= hidden_pad and A <= out_pad

    w1p = jnp.zeros((S, hidden_pad), jnp.float32).at[:, :H].set(w1).astype(jnp.bfloat16)
    b1p = jnp.zeros((1, hidden_pad), jnp.float32).at[:, :H].set(b1)
    w2p = jnp.zeros((hidden_pad, hidden_pad), jnp.float32).at[:H, :H].set(w2).astype(jnp.bfloat16)
    b2p = jnp.zeros((1, hidden_pad), jnp.float32).at[:, :H].set(b2)
    # fc3 stored transposed: (A_PAD, H_PAD), bias as (A_PAD, 1) column.
    w3tp = jnp.zeros((out_pad, hidden_pad), jnp.float32).at[:A, :H].set(w3.T).astype(jnp.bfloat16)
    b3tp = jnp.zeros((out_pad, 1), jnp.float32).at[:A, 0].set(b3[0])
    return (w1p, b1p, w2p, b2p, w3tp, b3tp)


def _choose_tiling(B, block_b):
    """Return (TB, B_pad, n_tiles)."""
    if B < 256:
        # Single tile, padded only to the 8-row sublane minimum. Tiny batches (the
        # typical RL act() call) are launch/latency-bound; no in-kernel tuning helps.
        TB = _round_up(max(B, 8), 8)
        return TB, TB, 1
    n = _cdiv(B, block_b)
    if n == 1:
        n = 2          # >=2 tiles so the "parallel" axis feeds both v7x TensorCores
    if n % 2:
        n += 1         # even tile count keeps the two cores balanced
    TB = _round_up(_cdiv(B, n), 128)   # multiple of 128 -> lane-dense output tiles
    return TB, n * TB, n


@functools.partial(jax.jit, static_argnames=("action_size", "block_b"))
def qnetwork_forward(state, padded_params, action_size, block_b=1024):
    """state: (B, state_size) f32 -> (B, action_size) f32."""
    w1, b1, w2, b2, w3t, b3t = padded_params
    B, S = state.shape
    H_PAD = w1.shape[1]
    A_PAD = w3t.shape[0]

    TB, B_pad, n_tiles = _choose_tiling(B, block_b)
    if B_pad != B:
        state = jnp.pad(state, ((0, B_pad - B), (0, 0)))   # cheap: input is only S=8 wide

    flops = 2 * B_pad * (S * H_PAD + H_PAD * H_PAD + H_PAD * A_PAD)
    bytes_accessed = (B_pad * S * 4                        # state in (f32)
                      + (w1.size + w2.size + w3t.size) * 2  # bf16 weights (fetched once)
                      + (b1.size + b2.size + b3t.size) * 4  # f32 biases
                      + A_PAD * B_pad * 4)                  # packed output (f32)

    out_t = pl.pallas_call(
        qnetwork_kernel,
        out_shape=jax.ShapeDtypeStruct((A_PAD, B_pad), jnp.float32),
        grid_spec=pltpu.PrefetchScalarGridSpec(
            num_scalar_prefetch=0,
            grid=(n_tiles,),
            in_specs=[
                pl.BlockSpec((TB, S), lambda i: (i, 0)),    # state tile (pipelined)
                pl.BlockSpec(w1.shape, lambda i: (0, 0)),   # weights/biases: constant block
                pl.BlockSpec(b1.shape, lambda i: (0, 0)),   # index -> DMA'd once, VMEM-resident
                pl.BlockSpec(w2.shape, lambda i: (0, 0)),
                pl.BlockSpec(b2.shape, lambda i: (0, 0)),
                pl.BlockSpec(w3t.shape, lambda i: (0, 0)),
                pl.BlockSpec(b3t.shape, lambda i: (0, 0)),
            ],
            out_specs=pl.BlockSpec((A_PAD, TB), lambda i: (0, i)),
        ),
        compiler_params=pltpu.CompilerParams(
            dimension_semantics=("parallel",),              # shard batch tiles across TCs (v7x)
        ),
        cost_estimate=pl.CostEstimate(
            flops=flops, transcendentals=0, bytes_accessed=bytes_accessed),
    )(state, w1, b1, w2, b2, w3t, b3t)

    # Epilogue on the packed (A_PAD, B_pad) result only touches ~8*B_pad*4 bytes
    # (vs. re-reading a (B_pad, 128) slab before); consumers that want zero epilogue
    # (e.g. argmax over Q-values) can take out_t directly.
    return out_t[:action_size, :B].T


def init_linear(key, fan_in, fan_out):
    """Deterministic init matching nn.Linear's U(-1/sqrt(fan_in), 1/sqrt(fan_in))."""
    kw, kb = jax.random.split(key)
    bound = 1.0 / jnp.sqrt(jnp.float32(fan_in))
    w = jax.random.uniform(kw, (fan_in, fan_out), jnp.float32, -bound, bound)  # (in, out)
    b = jax.random.uniform(kb, (1, fan_out), jnp.float32, -bound, bound)
    return w, b


def ref_forward_f32(state, params):
    w1, b1, w2, b2, w3, b3 = params
    h = jnp.maximum(state @ w1 + b1, 0.0)
    h = jnp.maximum(h @ w2 + b2, 0.0)
    return h @ w3 + b3


def ref_forward_bf16(state, padded_params, action_size):
    """Same bf16-operand / f32-accumulate math as the kernel, in plain JAX."""
    w1, b1, w2, b2, w3t, b3t = padded_params
    x = state.astype(jnp.bfloat16)
    h1 = jnp.maximum(jnp.dot(x, w1, preferred_element_type=jnp.float32) + b1, 0.0)
    h2 = jnp.maximum(jnp.dot(h1.astype(jnp.bfloat16), w2,
                             preferred_element_type=jnp.float32) + b2, 0.0)
    out_t = lax.dot_general(w3t, h2.astype(jnp.bfloat16),
                            dimension_numbers=(((1,), (1,)), ((), ())),
                            preferred_element_type=jnp.float32) + b3t
    return out_t[:action_size, :].T


if __name__ == "__main__":
    # LunarLander-like sizes: state_size=8, action_size=4, hidden=64.
    state_size, action_size, batch = 8, 4, 2
    hidden = 64

    key = jax.random.PRNGKey(0)
    k_state, k_big, k1, k2, k3 = jax.random.split(key, 5)

    w1, b1 = init_linear(k1, state_size, hidden)
    w2, b2 = init_linear(k2, hidden, hidden)
    w3, b3 = init_linear(k3, hidden, action_size)
    params_f32 = (w1, b1, w2, b2, w3, b3)
    padded_params = prepare_params(*params_f32)

    # --- small batch (the module's typical single-step act() usage) ---
    state = jax.random.normal(k_state, (batch, state_size), jnp.float32)
    out = jax.block_until_ready(qnetwork_forward(state, padded_params, action_size))
    assert out.shape == (batch, action_size)
    assert jnp.allclose(out, ref_forward_bf16(state, padded_params, action_size),
                        atol=1e-3, rtol=1e-3)
    assert jnp.allclose(out, ref_forward_f32(state, params_f32), atol=5e-2, rtol=5e-2)

    # --- medium batch: exercises the 2-tile split (v7x parallel axis) + modest padding ---
    mid_batch = 300
    state_mid = jax.random.normal(k_big, (mid_batch, state_size), jnp.float32)
    out_mid = jax.block_until_ready(qnetwork_forward(state_mid, padded_params, action_size))
    assert out_mid.shape == (mid_batch, action_size)
    assert jnp.allclose(out_mid, ref_forward_bf16(state_mid, padded_params, action_size),
                        atol=1e-3, rtol=1e-3)
    assert jnp.allclose(out_mid, ref_forward_f32(state_mid, params_f32),
                        atol=5e-2, rtol=5e-2)

    # --- large batch: exercises the block_b=1024 multi-tile path ---
    big_batch = 4096
    state_big = jax.random.normal(k_big, (big_batch, state_size), jnp.float32)
    out_big = jax.block_until_ready(qnetwork_forward(state_big, padded_params, action_size))
    assert out_big.shape == (big_batch, action_size)
    assert jnp.allclose(out_big, ref_forward_bf16(state_big, padded_params, action_size),
                        atol=1e-3, rtol=1e-3)

    print("KERNEL_OK")
</pallas_src>

<mosaic_0001>
module attributes {stable_mosaic.version = 11 : i64} {
  func.func @qnetwork_kernel(%arg0: i32, %arg1: memref<8x8xf32, #tpu.memory_space<vmem>>, %arg2: memref<8x128xbf16, #tpu.memory_space<vmem>>, %arg3: memref<1x128xf32, #tpu.memory_space<vmem>>, %arg4: memref<128x128xbf16, #tpu.memory_space<vmem>>, %arg5: memref<1x128xf32, #tpu.memory_space<vmem>>, %arg6: memref<8x128xbf16, #tpu.memory_space<vmem>>, %arg7: memref<8x1xf32, #tpu.memory_space<vmem>>, %arg8: memref<8x8xf32, #tpu.memory_space<vmem>>) attributes {dimension_semantics = [#tpu.dimension_semantics<parallel>], iteration_bounds = array<i64: 1>, scalar_prefetch = 0 : i64, scratch_operands = 0 : i64, tpu.core_type = #tpu.core_type<tc>, window_params = [{transform_indices = @transform_0, window_bounds = array<i64: 8, 8>}, {pipeline_mode = #tpu.pipeline_mode<synchronous>, transform_indices = @transform_1, window_bounds = array<i64: 8, 128>}, {pipeline_mode = #tpu.pipeline_mode<synchronous>, transform_indices = @transform_2, window_bounds = array<i64: 1, 128>}, {pipeline_mode = #tpu.pipeline_mode<synchronous>, transform_indices = @transform_3, window_bounds = array<i64: 128, 128>}, {pipeline_mode = #tpu.pipeline_mode<synchronous>, transform_indices = @transform_4, window_bounds = array<i64: 1, 128>}, {pipeline_mode = #tpu.pipeline_mode<synchronous>, transform_indices = @transform_5, window_bounds = array<i64: 8, 128>}, {pipeline_mode = #tpu.pipeline_mode<synchronous>, transform_indices = @transform_6, window_bounds = array<i64: 8, 1>}, {transform_indices = @transform_7, window_bounds = array<i64: 8, 8>}]} {
    %c0 = arith.constant 0 : index
    %c0_0 = arith.constant 0 : index
    %0 = vector.load %arg1[%c0, %c0_0] : memref<8x8xf32, #tpu.memory_space<vmem>>, vector<8x8xf32>
    %1 = arith.truncf %0 : vector<8x8xf32> to vector<8x8xbf16>
    %c0_1 = arith.constant 0 : index
    %c0_2 = arith.constant 0 : index
    %2 = vector.load %arg2[%c0_1, %c0_2] : memref<8x128xbf16, #tpu.memory_space<vmem>>, vector<8x128xbf16>
    %cst = arith.constant dense<0.000000e+00> : vector<8x128xf32>
    %3 = tpu.matmul %1, %2, %cst {dimension_numbers = #tpu.dot_dimension_numbers<[1], [0], [0], [1], [0, 0, 1, 1], [], []>} : vector<8x8xbf16>, vector<8x128xbf16>, vector<8x128xf32> -> vector<8x128xf32>
    %c0_3 = arith.constant 0 : index
    %c0_4 = arith.constant 0 : index
    %4 = vector.load %arg3[%c0_3, %c0_4] : memref<1x128xf32, #tpu.memory_space<vmem>>, vector<1x128xf32>
    %5 = vector.broadcast %4 : vector<1x128xf32> to vector<8x128xf32>
    %6 = arith.addf %3, %5 : vector<8x128xf32>
    %cst_5 = arith.constant 0.000000e+00 : f32
    %7 = vector.broadcast %cst_5 : f32 to vector<8x128xf32>
    %8 = arith.maximumf %6, %7 : vector<8x128xf32>
    %9 = arith.truncf %8 : vector<8x128xf32> to vector<8x128xbf16>
    %c0_6 = arith.constant 0 : index
    %c0_7 = arith.constant 0 : index
    %10 = vector.load %arg4[%c0_6, %c0_7] : memref<128x128xbf16, #tpu.memory_space<vmem>>, vector<128x128xbf16>
    %cst_8 = arith.constant dense<0.000000e+00> : vector<8x128xf32>
    %11 = tpu.matmul %9, %10, %cst_8 {dimension_numbers = #tpu.dot_dimension_numbers<[1], [0], [0], [1], [0, 0, 1, 1], [], []>} : vector<8x128xbf16>, vector<128x128xbf16>, vector<8x128xf32> -> vector<8x128xf32>
    %c0_9 = arith.constant 0 : index
    %c0_10 = arith.constant 0 : index
    %12 = vector.load %arg5[%c0_9, %c0_10] : memref<1x128xf32, #tpu.memory_space<vmem>>, vector<1x128xf32>
    %13 = vector.broadcast %12 : vector<1x128xf32> to vector<8x128xf32>
    %14 = arith.addf %11, %13 : vector<8x128xf32>
    %cst_11 = arith.constant 0.000000e+00 : f32
    %15 = vector.broadcast %cst_11 : f32 to vector<8x128xf32>
    %16 = arith.maximumf %14, %15 : vector<8x128xf32>
    %c0_12 = arith.constant 0 : index
    %c0_13 = arith.constant 0 : index
    %17 = vector.load %arg6[%c0_12, %c0_13] : memref<8x128xbf16, #tpu.memory_space<vmem>>, vector<8x128xbf16>
    %18 = arith.truncf %16 : vector<8x128xf32> to vector<8x128xbf16>
    %cst_14 = arith.constant dense<0.000000e+00> : vector<8x8xf32>
    %19 = tpu.matmul %17, %18, %cst_14 {dimension_numbers = #tpu.dot_dimension_numbers<[1], [1], [0], [0], [0, 0, 1, 0], [], []>} : vector<8x128xbf16>, vector<8x128xbf16>, vector<8x8xf32> -> vector<8x8xf32>
    %c0_15 = arith.constant 0 : index
    %c0_16 = arith.constant 0 : index
    %20 = vector.load %arg7[%c0_15, %c0_16] : memref<8x1xf32, #tpu.memory_space<vmem>>, vector<8x1xf32>
    %21 = vector.broadcast %20 : vector<8x1xf32> to vector<8x8xf32>
    %22 = arith.addf %19, %21 : vector<8x8xf32>
    %c0_17 = arith.constant 0 : index
    %c0_18 = arith.constant 0 : index
    %23 = vector.load %arg8[%c0_17, %c0_18] : memref<8x8xf32, #tpu.memory_space<vmem>>, vector<8x8xf32>
    tpu.vector_store %arg8[%c0_17, %c0_18], %22 {strides = array<i32>} : memref<8x8xf32, #tpu.memory_space<vmem>>, vector<8x8xf32>,
    return
  }
  func.func @transform_0(%arg0: i32) -> (i32, i32) {
    %c0_i32 = arith.constant 0 : i32
    %c0_i32_0 = arith.constant 0 : i32
    return %arg0, %c0_i32 : i32, i32
  }
  func.func @transform_1(%arg0: i32) -> (i32, i32) {
    %c0_i32 = arith.constant 0 : i32
    %c0_i32_0 = arith.constant 0 : i32
    %c0_i32_1 = arith.constant 0 : i32
    return %c0_i32, %c0_i32_0 : i32, i32
  }
  func.func @transform_2(%arg0: i32) -> (i32, i32) {
    %c0_i32 = arith.constant 0 : i32
    %c0_i32_0 = arith.constant 0 : i32
    %c0_i32_1 = arith.constant 0 : i32
    return %c0_i32, %c0_i32_0 : i32, i32
  }
  func.func @transform_3(%arg0: i32) -> (i32, i32) {
    %c0_i32 = arith.constant 0 : i32
    %c0_i32_0 = arith.constant 0 : i32
    %c0_i32_1 = arith.constant 0 : i32
    return %c0_i32, %c0_i32_0 : i32, i32
  }
  func.func @transform_4(%arg0: i32) -> (i32, i32) {
    %c0_i32 = arith.constant 0 : i32
    %c0_i32_0 = arith.constant 0 : i32
    %c0_i32_1 = arith.constant 0 : i32
    return %c0_i32, %c0_i32_0 : i32, i32
  }
  func.func @transform_5(%arg0: i32) -> (i32, i32) {
    %c0_i32 = arith.constant 0 : i32
    %c0_i32_0 = arith.constant 0 : i32
    %c0_i32_1 = arith.constant 0 : i32
    return %c0_i32, %c0_i32_0 : i32, i32
  }
  func.func @transform_6(%arg0: i32) -> (i32, i32) {
    %c0_i32 = arith.constant 0 : i32
    %c0_i32_0 = arith.constant 0 : i32
    %c0_i32_1 = arith.constant 0 : i32
    return %c0_i32, %c0_i32_0 : i32, i32
  }
  func.func @transform_7(%arg0: i32) -> (i32, i32) {
    %c0_i32 = arith.constant 0 : i32
    %c0_i32_0 = arith.constant 0 : i32
    return %c0_i32, %arg0 : i32, i32
  }
}

</mosaic_0001>

<llo_original>
// kernel: qnetwork_forward.1
$region0: #{qnetwork_forward.1}
  #allocation0 [shape = 'u32[]', space=smem, size = 0x4, offset = 0x4, fixed_abs, tag = 'smem constant byte address 0x4 - core index']
  #allocation1 [shape = 'u32[72,128]{1,0:T(1,128)}', space=vmem, size = 0x9000, scoped, tag = 'internal scratch']
  %s0 = inlined_call_operand.vmem [shape: f32[8,8], index: 0, kind: input, shape index: {}]
  %s1 = inlined_call_operand.vmem [shape: bf16[8,128], index: 1, kind: input, shape index: {}]
  %s2 = inlined_call_operand.vmem [shape: f32[1,128], index: 2, kind: input, shape index: {}]
  %s3 = inlined_call_operand.hbm [shape: bf16[128,128], index: 3, kind: input, shape index: {}]
  %s4 = inlined_call_operand.vmem [shape: f32[1,128], index: 4, kind: input, shape index: {}]
  %s5 = inlined_call_operand.vmem [shape: bf16[8,128], index: 5, kind: input, shape index: {}]
  %s6 = inlined_call_operand.vmem [shape: f32[8,1], index: 6, kind: input, shape index: {}]
  %s7 = inlined_call_operand.vmem [shape: f32[8,8], index: 7, kind: output, shape index: {}]
  %s8 = sld [smem:[#allocation0]]
  $region42: #{qnetwork_forward.1} parent=0
    _
  %s10 = ssub.s32 1, %s8
  %s11 = scalar_select 0, %s10, %s8
  $region1: #{qnetwork_forward.1} parent=0
    #allocation2 [shape = 'u8[32768]{0}', space=vmem, size = 0x8000, scoped, tag = 'input window, operand 3, single buffered']
    #allocation3 [shape = 's32[1]{0}', space=sflag, size = 0x4, scoped, tag = 'scoped memory for qnetwork_forward.1']
    %12 = vsyncpa [#allocation3], 0
    // Predicated region
    $region2: #{qnetwork_forward.1} parent=1 // pred_check
      _
    $region3: #{qnetwork_forward.1} parent=1 // pred_check_branch
      %14 = sbr.rel (0) target = $region5
    $region4: #{qnetwork_forward.1} parent=1 // pred_region
      _
    $region5: #{qnetwork_forward.1} parent=1 // pred_fallthru
      _
    // Predicated region
    $region6: #{qnetwork_forward.1} parent=1 // pred_check
      _
    $region7: #{qnetwork_forward.1} parent=1 // pred_check_branch
      %16 = sbr.rel (0) target = $region9
    $region8: #{qnetwork_forward.1} parent=1 // pred_region
      _
    $region9: #{qnetwork_forward.1} parent=1 // pred_fallthru
      _
    // Predicated region
    $region10: #{qnetwork_forward.1} parent=1 // pred_check
      _
    $region11: #{qnetwork_forward.1} parent=1 // pred_check_branch
      %18 = sbr.rel (0) target = $region13
    $region12: #{qnetwork_forward.1} parent=1 // pred_region
      _
    $region13: #{qnetwork_forward.1} parent=1 // pred_fallthru
      _
    // Predicated region
    $region14: #{qnetwork_forward.1} parent=1 // pred_check
      _
    $region15: #{qnetwork_forward.1} parent=1 // pred_check_branch
      %20 = sbr.rel (0) target = $region17
    $region16: #{qnetwork_forward.1} parent=1 // pred_region
      %22 = vsyncadd [#allocation3], 0
      %s23 = sshll.u32 %s3, 4
      %s24 = int_to_ptr.hbm [resolvable:$true] %s23
      %s25 = sshll.u32 [#allocation2], 4
      %s26 = int_to_ptr.vmem [resolvable:$true] %s25
      %31 = dma.hbm_to_vmem [thread:$0]  %s24, 1024, %s26, [#allocation3], 64, 64, 4
    $region17: #{qnetwork_forward.1} parent=1 // pred_fallthru
      _
    // Predicated region
    $region18: #{qnetwork_forward.1} parent=1 // pred_check
      _
    $region19: #{qnetwork_forward.1} parent=1 // pred_check_branch
      %33 = sbr.rel (0) target = $region21
    $region20: #{qnetwork_forward.1} parent=1 // pred_region
      _
    $region21: #{qnetwork_forward.1} parent=1 // pred_fallthru
      _
    // Predicated region
    $region22: #{qnetwork_forward.1} parent=1 // pred_check
      _
    $region23: #{qnetwork_forward.1} parent=1 // pred_check_branch
      %35 = sbr.rel (0) target = $region25
    $region24: #{qnetwork_forward.1} parent=1 // pred_region
      _
    $region25: #{qnetwork_forward.1} parent=1 // pred_fallthru
      _
    // Predicated region
    $region26: #{qnetwork_forward.1} parent=1 // pred_check
      _
    $region27: #{qnetwork_forward.1} parent=1 // pred_check_branch
      %37 = sbr.rel (0) target = $region29
    $region28: #{qnetwork_forward.1} parent=1 // pred_region
      _
    $region29: #{qnetwork_forward.1} parent=1 // pred_fallthru
      _
    // Predicated region
    $region30: #{qnetwork_forward.1} parent=1 // pred_check
      _
    $region31: #{qnetwork_forward.1} parent=1 // pred_check_branch
      %39 = sbr.rel (0) target = $region33
    $region32: #{qnetwork_forward.1} parent=1 // pred_region
      %41 = dma.done [#allocation3], 1024
    $region33: #{qnetwork_forward.1} parent=1 // pred_fallthru
      _
    %v43 = vld [vmem:[%s0] sm:$0xff]
    %v44 = vpack.c.bf16 %v43, %v43
    %v45 = vld [vmem:[%s1] sm:$0xf]
    %v46 = vld [vmem:[%s2] sm:$0x1]
    %v48 = vperm.slane %v46, 0
    %vm50 = vcmask 64512
    %v52 = vsel %vm50, %v44, 0
    %vm54 = vcmask 1043456
    %v56 = vsel %vm54, %v45, 0
    %58 = vmatpush.bf16.msra.mxu0 0
    %59 = vmatpush.bf16.msra.mxu0 0
    %60 = vmatpush.bf16.msra.mxu0 0
    %61 = vmatpush.bf16.msra.mxu0 0
    %62 = vmatpush.bf16.msra.mxu0 0
    %63 = vmatpush.bf16.msra.mxu0 0
    %64 = vmatpush.bf16.msra.mxu0 0
    %65 = vmatpush.bf16.msra.mxu0 %v56
    %66 = vmatmul.bf16.gmra.mxu0 %v52
    %v67 = vpop.f32.mrf.mxu0
    %v68 = vadd.f32 %v48, %v67
    %v69 = vpop.f32.mrf.mxu0
    %70 = vdwg.mxu0
    %v71 = vmax.f32 %v68, 0.0
    %v72 = vpack.c.bf16 %v71, %v71
    %v73 = vld [vmem:[#allocation2] sm:$0xf]
    %v74 = vld [vmem:[#allocation2 + $0x4] sm:$0xf]
    %v75 = vld [vmem:[#allocation2 + $0x8] sm:$0xf]
    %v76 = vld [vmem:[#allocation2 + $0xc] sm:$0xf]
    %v77 = vld [vmem:[#allocation2 + $0x10] sm:$0xf]
    %v78 = vld [vmem:[#allocation2 + $0x14] sm:$0xf]
    %v79 = vld [vmem:[#allocation2 + $0x18] sm:$0xf]
    %v80 = vld [vmem:[#allocation2 + $0x1c] sm:$0xf]
    %v81 = vld [vmem:[#allocation2 + $0x20] sm:$0xf]
    %v82 = vld [vmem:[#allocation2 + $0x24] sm:$0xf]
    %v83 = vld [vmem:[#allocation2 + $0x28] sm:$0xf]
    %v84 = vld [vmem:[#allocation2 + $0x2c] sm:$0xf]
    %v85 = vld [vmem:[#allocation2 + $0x30] sm:$0xf]
    %v86 = vld [vmem:[#allocation2 + $0x34] sm:$0xf]
    %v87 = vld [vmem:[#allocation2 + $0x38] sm:$0xf]
    %v88 = vld [vmem:[#allocation2 + $0x3c] sm:$0xf]
    %v89 = vld [vmem:[%s4] sm:$0x1]
    %v91 = vperm.slane %v89, 0
    %v109 = vunpack.c.l.b16 %v73
    %v110 = vunpack.c.l.b16 %v74
    %v111 = vunpack.c.l.b16 %v75
    %v112 = vunpack.c.l.b16 %v76
    %v113 = vunpack.c.l.b16 %v77
    %v114 = vunpack.c.l.b16 %v78
    %v115 = vunpack.c.l.b16 %v79
    %v116 = vunpack.c.l.b16 %v80
    %v117 = vunpack.c.l.b16 %v81
    %v118 = vunpack.c.l.b16 %v82
    %v119 = vunpack.c.l.b16 %v83
    %v120 = vunpack.c.l.b16 %v84
    %v121 = vunpack.c.l.b16 %v85
    %v122 = vunpack.c.l.b16 %v86
    %v123 = vunpack.c.l.b16 %v87
    %v124 = vunpack.c.l.b16 %v88
    %v125 = vpack.c.b16 %v110, %v109
    %v126 = vpack.c.b16 %v112, %v111
    %v127 = vpack.c.b16 %v114, %v113
    %v128 = vpack.c.b16 %v116, %v115
    %v129 = vpack.c.b16 %v118, %v117
    %v130 = vpack.c.b16 %v120, %v119
    %v131 = vpack.c.b16 %v122, %v121
    %v132 = vpack.c.b16 %v124, %v123
    %141 = vmatpush.bf16.msra.mxu0 %v132
    %142 = vmatpush.bf16.msra.mxu0 %v131
    %143 = vmatpush.bf16.msra.mxu0 %v130
    %144 = vmatpush.bf16.msra.mxu0 %v129
    %145 = vmatpush.bf16.msra.mxu0 %v128
    %146 = vmatpush.bf16.msra.mxu0 %v127
    %147 = vmatpush.bf16.msra.mxu0 %v126
    %148 = vmatpush.bf16.msra.mxu0 %v125
    %149 = vmatmul.bf16.gmra.mxu0 %v72
    %v150 = vpop.f32.mrf.mxu0
    %v151 = vadd.f32 %v91, %v150
    %v152 = vpop.f32.mrf.mxu0
    %153 = vdwg.mxu0
    %v154 = vmax.f32 %v151, 0.0
    %v155 = vld [vmem:[%s5] sm:$0xf]
    %v156 = vpack.c.bf16 %v154, %v154
    %v157 = vld [vmem:[%s6] sm:$0xff]
    %159 = vset.pattern.permute.xlu0 0
    %160 = vperm.xlu0 %159, %v157
    %v161 = vpop.permute.xlu0 %160
    %163 = vmatpush.bf16.xpose.msra.mxu0 0
    %164 = vmatpush.bf16.xpose.msra.mxu0 0
    %165 = vmatpush.bf16.xpose.msra.mxu0 0
    %166 = vmatpush.bf16.xpose.msra.mxu0 0
    %167 = vmatpush.bf16.xpose.msra.mxu0 0
    %168 = vmatpush.bf16.xpose.msra.mxu0 0
    %169 = vmatpush.bf16.xpose.msra.mxu0 0
    %170 = vmatpush.bf16.xpose.msra.mxu0 %v156
    %171 = vmatmul.bf16.gmra.mxu0 %v155
    %v172 = vpop.f32.mrf.mxu0
    %v173 = vadd.f32 %v161, %v172
    %v174 = vpop.f32.mrf.mxu0
    %175 = vdwg.mxu0
    %176 = vst.msk [vmem:[%s7] sm:$0xff] %vm50, %v173
    // Predicated region
    $region34: #{qnetwork_forward.1} parent=1 // pred_check
      _
    $region35: #{qnetwork_forward.1} parent=1 // pred_check_branch
      %178 = sbr.rel (0) target = $region37
    $region36: #{qnetwork_forward.1} parent=1 // pred_region
      _
    $region37: #{qnetwork_forward.1} parent=1 // pred_fallthru
      _
    // Predicated region
    $region38: #{qnetwork_forward.1} parent=1 // pred_check
      _
    $region39: #{qnetwork_forward.1} parent=1 // pred_check_branch
      %180 = sbr.rel (0) target = $region41
    $region40: #{qnetwork_forward.1} parent=1 // pred_region
      _
    $region41: #{qnetwork_forward.1} parent=1 // pred_fallthru
      _
    %181 = vsyncpa [#allocation3], 1

</llo_original>
